<compile_context>
chip_gen: v7x
topology: tpu7x:2x2x1
jax: 0.10.0
libtpu: 0.0.40
codegen_flags: <defaults>
</compile_context>

<pallas_src>
import functools

import jax
import jax.numpy as jnp
from jax import lax
from jax.experimental import pallas as pl
from jax.experimental.pallas import tpu as pltpu


# ------------------------------ Pallas kernel ------------------------------ #

def _fused_decoder_kernel(x_ref, w1_ref, b1_ref, w2_ref, b2_ref, w3_ref, b3_ref,
                          o_ref, *, height, width, c_mid):
    """Whole batch, everything stays in VMEM.

    x_ref  : (Cin, L)            L = N*H*W, spatial(+batch) on lanes, bf16
    w1_ref : (Cmid, Cin)         BN1-folded 1x1 conv weight (bf16)
    b1_ref : (Cmid, 1)           folded BN1 bias (f32)
    w2_ref : (4*4*Cmid, Cmid)    4 shift-group parity blocks stacked on rows
    b2_ref : (4*Cmid, 1)         folded BN2 bias tiled over the 4 parities
    w3_ref : (4*Cout, 4*Cmid)    block-diagonal 1x1 conv weight (BN3 folded)
    b3_ref : (4*Cout, 1)         folded BN3 bias tiled over the 4 parities
    o_ref  : (4*Cout, L)         parity-stacked output (f32)
    """
    L = x_ref.shape[-1]
    H, W = height, width
    P = 4 * c_mid

    # ---- stage 1: 1x1 conv (+ folded BN) + ReLU -------------------------- #
    h1 = jnp.dot(w1_ref[...], x_ref[...], preferred_element_type=jnp.float32)
    h1 = jnp.maximum(h1 + b1_ref[...], 0.0)                    # (Cmid, L) f32

    # ---- per-image boundary masks (iota + compares, VPU) ------------------ #
    t = lax.broadcasted_iota(jnp.int32, (1, L), 1)
    if (W & (W - 1)) == 0 and (H & (H - 1)) == 0:    # pow-2 fast path (static)
        q = t & (W - 1)
        p = (t >> (W.bit_length() - 1)) & (H - 1)
    else:
        q = t % W
        p = (t // W) % H
    col_ok = q < (W - 1)
    row_ok = p < (H - 1)

    # ---- stage 2: ConvTranspose2d(3, s=2, p=1, op=1) in sub-pixel form ---- #
    # Single MXU matmul computes the contribution of every shift group to
    # every output parity; the "+1 row / +1 col" shifts are applied afterwards
    # as XLU lane rolls + boundary masks (they commute with the channel dot).
    z = jnp.dot(w2_ref[...], h1.astype(w2_ref.dtype),
                preferred_element_type=jnp.float32)             # (4*P, L) f32

    def shifted(block, d, ok):
        # out[:, t] = block[:, t + d] inside the image, else 0.
        rolled = pltpu.roll(block, shift=L - d, axis=1)   # == jnp.roll(.., -d)
        return jnp.where(ok, rolled, 0.0)

    acc = z[0:P, :]                                             # shift (0, 0)
    acc = acc + shifted(z[P:2 * P, :], 1, col_ok)               # shift (0, 1)
    acc = acc + shifted(z[2 * P:3 * P, :], W, row_ok)           # shift (1, 0)
    acc = acc + shifted(z[3 * P:4 * P, :], W + 1,
                        jnp.logical_and(row_ok, col_ok))        # shift (1, 1)
    h2 = jnp.maximum(acc + b2_ref[...], 0.0)                    # (4*Cmid, L)

    # ---- stage 3: per-parity 1x1 conv (block-diag weight) + BN + ReLU ----- #
    y = jnp.dot(w3_ref[...], h2.astype(w3_ref.dtype),
                preferred_element_type=jnp.float32)
    y = jnp.maximum(y + b3_ref[...], 0.0)                       # (4*Cout, L)
    o_ref[...] = y.astype(o_ref.dtype)


# --------------------------- parameter preparation -------------------------- #

def fold_bn(conv_bias, gamma, beta, mean, var, eps=1e-5):
    scale = gamma / jnp.sqrt(var + eps)
    bias = (conv_bias - mean) * scale + beta
    return scale, bias


def fold_decoder_params(params, compute_dtype=jnp.bfloat16):
    """Fold BN into conv weights and build the sub-pixel weight blocks.

    Call ONCE at parameter-load time (hoisted out of the per-call graph).
    """
    c_mid = params["w1"].shape[0]

    s1, b1 = fold_bn(params["b1"], params["bn1_gamma"], params["bn1_beta"],
                     params["bn1_mean"], params["bn1_var"])
    s2, b2 = fold_bn(params["b2"], params["bn2_gamma"], params["bn2_beta"],
                     params["bn2_mean"], params["bn2_var"])
    s3, b3 = fold_bn(params["b3"], params["bn3_gamma"], params["bn3_beta"],
                     params["bn3_mean"], params["bn3_var"])

    w1f = s1[:, None] * params["w1"]                            # (Cmid, Cin)

    # ConvTranspose2d sub-pixel decomposition.  Output parity (ph, pw) of the
    # 2x-upsampled image uses tap (kh, kw) of the transposed-conv weight
    # applied to h1 shifted by (dh, dw) in {0,1}^2:
    #   ph == 0 -> only dh == 0, kh == 1
    #   ph == 1 -> dh == 0 with kh == 2, dh == 1 with kh == 0   (same for w)
    w2 = params["w2"]                                           # (Ci, Co, 3, 3)
    shift_blocks = []
    for dh in range(2):
        for dw in range(2):
            rows = []
            for ph in range(2):
                for pw in range(2):
                    if (dh == 1 and ph == 0) or (dw == 1 and pw == 0):
                        rows.append(jnp.zeros((c_mid, c_mid), jnp.float32))
                    else:
                        kh = 1 if ph == 0 else 2 - 2 * dh
                        kw = 1 if pw == 0 else 2 - 2 * dw
                        rows.append(s2[:, None] * w2[:, :, kh, kw].T)  # (co, ci)
            shift_blocks.append(jnp.concatenate(rows, axis=0))   # (4*Cmid, Cmid)
    # All 4 shift groups stacked along rows -> single stage-2 matmul LHS.
    w2_rows = jnp.concatenate(shift_blocks, axis=0)              # (16*Cmid, Cmid)

    w3f = s3[:, None] * params["w3"]                             # (Cout, Cmid)
    # 75% structural zeros; fine at these channel counts (per review).
    w3_big = jnp.kron(jnp.eye(4, dtype=jnp.float32), w3f)        # (4*Cout, 4*Cmid)

    return {
        "w1": w1f.astype(compute_dtype), "b1": b1[:, None],
        "w2": w2_rows.astype(compute_dtype), "b2": jnp.tile(b2, 4)[:, None],
        "w3": w3_big.astype(compute_dtype), "b3": jnp.tile(b3, 4)[:, None],
    }


def init_params(key, in_channels, n_filters):
    c_mid = in_channels // 4
    ks = jax.random.split(key, 18)

    def n(k, shape, s=0.1):
        return s * jax.random.normal(k, shape, jnp.float32)

    return {
        # conv1: Conv2d(in_channels, c_mid, 1); weight (Cout, Cin)
        "w1": n(ks[0], (c_mid, in_channels)),
        "b1": n(ks[1], (c_mid,)),
        "bn1_gamma": 1.0 + n(ks[2], (c_mid,)),
        "bn1_beta": n(ks[3], (c_mid,)),
        "bn1_mean": n(ks[4], (c_mid,)),
        "bn1_var": 1.0 + jnp.abs(n(ks[5], (c_mid,))),
        # deconv2: ConvTranspose2d(c_mid, c_mid, 3); weight (Cin, Cout, 3, 3)
        "w2": n(ks[6], (c_mid, c_mid, 3, 3)),
        "b2": n(ks[7], (c_mid,)),
        "bn2_gamma": 1.0 + n(ks[8], (c_mid,)),
        "bn2_beta": n(ks[9], (c_mid,)),
        "bn2_mean": n(ks[10], (c_mid,)),
        "bn2_var": 1.0 + jnp.abs(n(ks[11], (c_mid,))),
        # conv3: Conv2d(c_mid, n_filters, 1); weight (Cout, Cin)
        "w3": n(ks[12], (n_filters, c_mid)),
        "b3": n(ks[13], (n_filters,)),
        "bn3_gamma": 1.0 + n(ks[14], (n_filters,)),
        "bn3_beta": n(ks[15], (n_filters,)),
        "bn3_mean": n(ks[16], (n_filters,)),
        "bn3_var": 1.0 + jnp.abs(n(ks[17], (n_filters,))),
    }


# ------------------------------- forward pass ------------------------------ #

def decoder_block_forward(x_nchw, folded):
    n, c_in, h, w = x_nchw.shape
    hw = h * w
    L = n * hw
    c_mid = folded["w1"].shape[0]
    c_out = folded["w3"].shape[0] // 4

    # Channels-first (C, N*HW): batch folded onto the lane axis (lane-dense).
    x2d = jnp.transpose(x_nchw.reshape(n, c_in, hw), (1, 0, 2))
    x2d = x2d.reshape(c_in, L).astype(folded["w1"].dtype)

    kernel = functools.partial(_fused_decoder_kernel,
                               height=h, width=w, c_mid=c_mid)

    out = pl.pallas_call(
        kernel,
        out_shape=jax.ShapeDtypeStruct((4 * c_out, L), jnp.float32),
        grid=(1,),
        in_specs=[
            pl.BlockSpec((c_in, L), lambda i: (0, 0)),
            pl.BlockSpec((c_mid, c_in), lambda i: (0, 0)),
            pl.BlockSpec((c_mid, 1), lambda i: (0, 0)),
            pl.BlockSpec((16 * c_mid, c_mid), lambda i: (0, 0)),
            pl.BlockSpec((4 * c_mid, 1), lambda i: (0, 0)),
            pl.BlockSpec((4 * c_out, 4 * c_mid), lambda i: (0, 0)),
            pl.BlockSpec((4 * c_out, 1), lambda i: (0, 0)),
        ],
        out_specs=pl.BlockSpec((4 * c_out, L), lambda i: (0, 0)),
        compiler_params=pltpu.CompilerParams(
            dimension_semantics=("arbitrary",)),
    )(x2d, folded["w1"], folded["b1"], folded["w2"], folded["b2"],
      folded["w3"], folded["b3"])

    # TODO(synk): the 2x2 sub-pixel interleave (strided lane scatter) has no
    # clean Pallas strided-lane store; one XLA reshape/transpose (negligible).
    y = out.reshape(2, 2, c_out, n, h, w)        # (ph, pw, co, n, p, q)
    y = jnp.transpose(y, (3, 2, 4, 0, 5, 1))     # (n, co, p, ph, q, pw)
    return y.reshape(n, c_out, 2 * h, 2 * w)     # NCHW


# --------------------------- pure-JAX reference ----------------------------- #

def decoder_block_reference(x_nchw, params, eps=1e-5):
    def bn(y, g, b, m, v):
        return ((y - m[None, :, None, None])
                / jnp.sqrt(v[None, :, None, None] + eps)
                * g[None, :, None, None] + b[None, :, None, None])

    hp = lax.Precision.HIGHEST
    dn = ("NCHW", "OIHW", "NCHW")

    y = lax.conv_general_dilated(x_nchw, params["w1"][:, :, None, None],
                                 (1, 1), "VALID", dimension_numbers=dn,
                                 precision=hp)
    y = y + params["b1"][None, :, None, None]
    y = jax.nn.relu(bn(y, params["bn1_gamma"], params["bn1_beta"],
                       params["bn1_mean"], params["bn1_var"]))

    w2 = params["w2"]
    w2_conv = jnp.transpose(w2[:, :, ::-1, ::-1], (1, 0, 2, 3))   # OIHW, flipped
    y = lax.conv_general_dilated(y, w2_conv, (1, 1),
                                 padding=((1, 2), (1, 2)),
                                 lhs_dilation=(2, 2),
                                 dimension_numbers=dn, precision=hp)
    y = y + params["b2"][None, :, None, None]
    y = jax.nn.relu(bn(y, params["bn2_gamma"], params["bn2_beta"],
                       params["bn2_mean"], params["bn2_var"]))

    y = lax.conv_general_dilated(y, params["w3"][:, :, None, None],
                                 (1, 1), "VALID", dimension_numbers=dn,
                                 precision=hp)
    y = y + params["b3"][None, :, None, None]
    y = jax.nn.relu(bn(y, params["bn3_gamma"], params["bn3_beta"],
                       params["bn3_mean"], params["bn3_var"]))
    return y


# ---------------------------------- main ------------------------------------ #

if __name__ == "__main__":
    key = jax.random.PRNGKey(0)
    k_x, k_p = jax.random.split(key)

    in_channels, n_filters = 16, 8
    batch, height, width = 2, 16, 16

    x = jax.random.normal(k_x, (batch, in_channels, height, width), jnp.float32)
    params = init_params(k_p, in_channels, n_filters)

    # BN folding / block building done ONCE, outside the per-call graph.
    folded = fold_decoder_params(params, compute_dtype=jnp.bfloat16)

    fwd = jax.jit(decoder_block_forward)
    out = jax.block_until_ready(fwd(x, folded))

    assert out.shape == (batch, n_filters, 2 * height, 2 * width), out.shape

    ref = decoder_block_reference(x, params)
    err = float(jnp.max(jnp.abs(out - ref)))
    # Tolerance covers bf16 matmul operands (f32 accumulate) on the MXU; any
    # structural error (wrong roll / wrong BN fold / wrong parity) is >= 1e-1.
    assert bool(jnp.allclose(out, ref, atol=4e-2, rtol=4e-2)), (
        "max abs diff: %f" % err)

    print("KERNEL_OK")
</pallas_src>

<mosaic_0001>
module attributes {stable_mosaic.version = 11 : i64} {
  func.func @_fused_decoder_kernel(%arg0: i32, %arg1: memref<16x512xbf16, #tpu.memory_space<vmem>>, %arg2: memref<4x16xbf16, #tpu.memory_space<vmem>>, %arg3: memref<4x1xf32, #tpu.memory_space<vmem>>, %arg4: memref<64x4xbf16, #tpu.memory_space<vmem>>, %arg5: memref<16x1xf32, #tpu.memory_space<vmem>>, %arg6: memref<32x16xbf16, #tpu.memory_space<vmem>>, %arg7: memref<32x1xf32, #tpu.memory_space<vmem>>, %arg8: memref<32x512xf32, #tpu.memory_space<vmem>>) attributes {dimension_semantics = [#tpu.dimension_semantics<arbitrary>], iteration_bounds = array<i64: 1>, scalar_prefetch = 0 : i64, scratch_operands = 0 : i64, tpu.core_type = #tpu.core_type<tc>, window_params = [{pipeline_mode = #tpu.pipeline_mode<synchronous>, transform_indices = @transform_0, window_bounds = array<i64: 16, 512>}, {pipeline_mode = #tpu.pipeline_mode<synchronous>, transform_indices = @transform_1, window_bounds = array<i64: 4, 16>}, {pipeline_mode = #tpu.pipeline_mode<synchronous>, transform_indices = @transform_2, window_bounds = array<i64: 4, 1>}, {pipeline_mode = #tpu.pipeline_mode<synchronous>, transform_indices = @transform_3, window_bounds = array<i64: 64, 4>}, {pipeline_mode = #tpu.pipeline_mode<synchronous>, transform_indices = @transform_4, window_bounds = array<i64: 16, 1>}, {pipeline_mode = #tpu.pipeline_mode<synchronous>, transform_indices = @transform_5, window_bounds = array<i64: 32, 16>}, {pipeline_mode = #tpu.pipeline_mode<synchronous>, transform_indices = @transform_6, window_bounds = array<i64: 32, 1>}, {pipeline_mode = #tpu.pipeline_mode<synchronous>, transform_indices = @transform_7, window_bounds = array<i64: 32, 512>}]} {
    %c0 = arith.constant 0 : index
    %c0_0 = arith.constant 0 : index
    %0 = vector.load %arg2[%c0, %c0_0] : memref<4x16xbf16, #tpu.memory_space<vmem>>, vector<4x16xbf16>
    %c0_1 = arith.constant 0 : index
    %c0_2 = arith.constant 0 : index
    %1 = vector.load %arg1[%c0_1, %c0_2] : memref<16x512xbf16, #tpu.memory_space<vmem>>, vector<16x512xbf16>
    %cst = arith.constant dense<0.000000e+00> : vector<4x512xf32>
    %2 = tpu.matmul %0, %1, %cst {dimension_numbers = #tpu.dot_dimension_numbers<[1], [0], [0], [1], [0, 0, 1, 1], [], []>} : vector<4x16xbf16>, vector<16x512xbf16>, vector<4x512xf32> -> vector<4x512xf32>
    %c0_3 = arith.constant 0 : index
    %c0_4 = arith.constant 0 : index
    %3 = vector.load %arg3[%c0_3, %c0_4] : memref<4x1xf32, #tpu.memory_space<vmem>>, vector<4x1xf32>
    %4 = vector.broadcast %3 : vector<4x1xf32> to vector<4x512xf32>
    %5 = arith.addf %2, %4 : vector<4x512xf32>
    %cst_5 = arith.constant 0.000000e+00 : f32
    %6 = vector.broadcast %cst_5 : f32 to vector<4x512xf32>
    %7 = arith.maximumf %5, %6 : vector<4x512xf32>
    %8 = tpu.iota {dimensions = array<i32: 1>} : vector<1x512xi32>
    %c15_i32 = arith.constant 15 : i32
    %9 = vector.broadcast %c15_i32 : i32 to vector<1x512xi32>
    %10 = arith.andi %8, %9 : vector<1x512xi32>
    %c4_i32 = arith.constant 4 : i32
    %11 = vector.broadcast %c4_i32 : i32 to vector<1x512xi32>
    %12 = arith.shrsi %8, %11 : vector<1x512xi32>
    %c15_i32_6 = arith.constant 15 : i32
    %13 = vector.broadcast %c15_i32_6 : i32 to vector<1x512xi32>
    %14 = arith.andi %12, %13 : vector<1x512xi32>
    %c15_i32_7 = arith.constant 15 : i32
    %15 = vector.broadcast %c15_i32_7 : i32 to vector<1x512xi32>
    %16 = arith.cmpi slt, %10, %15 : vector<1x512xi32>
    %c15_i32_8 = arith.constant 15 : i32
    %17 = vector.broadcast %c15_i32_8 : i32 to vector<1x512xi32>
    %18 = arith.cmpi slt, %14, %17 : vector<1x512xi32>
    %c0_9 = arith.constant 0 : index
    %c0_10 = arith.constant 0 : index
    %19 = vector.load %arg4[%c0_9, %c0_10] : memref<64x4xbf16, #tpu.memory_space<vmem>>, vector<64x4xbf16>
    %20 = arith.truncf %7 : vector<4x512xf32> to vector<4x512xbf16>
    %cst_11 = arith.constant dense<0.000000e+00> : vector<64x512xf32>
    %21 = tpu.matmul %19, %20, %cst_11 {dimension_numbers = #tpu.dot_dimension_numbers<[1], [0], [0], [1], [0, 0, 1, 1], [], []>} : vector<64x4xbf16>, vector<4x512xbf16>, vector<64x512xf32> -> vector<64x512xf32>
    %22 = vector.extract_strided_slice %21 {offsets = [0, 0], sizes = [16, 512], strides = [1, 1]} : vector<64x512xf32> to vector<16x512xf32>
    %23 = vector.extract_strided_slice %21 {offsets = [16, 0], sizes = [16, 512], strides = [1, 1]} : vector<64x512xf32> to vector<16x512xf32>
    %c511_i32 = arith.constant 511 : i32
    %24 = tpu.dynamic_rotate %23 by %c511_i32 dim 1 : vector<16x512xf32>, i32 -> vector<16x512xf32>
    %cst_12 = arith.constant 0.000000e+00 : f32
    %25 = vector.shape_cast %16 : vector<1x512xi1> to vector<1x512xi1>
    %26 = vector.broadcast %25 : vector<1x512xi1> to vector<16x512xi1>
    %27 = vector.broadcast %cst_12 : f32 to vector<16x512xf32>
    %28 = arith.select %26, %24, %27 : vector<16x512xi1>, vector<16x512xf32>
    %29 = arith.addf %22, %28 : vector<16x512xf32>
    %30 = vector.extract_strided_slice %21 {offsets = [32, 0], sizes = [16, 512], strides = [1, 1]} : vector<64x512xf32> to vector<16x512xf32>
    %c496_i32 = arith.constant 496 : i32
    %31 = tpu.dynamic_rotate %30 by %c496_i32 dim 1 : vector<16x512xf32>, i32 -> vector<16x512xf32>
    %cst_13 = arith.constant 0.000000e+00 : f32
    %32 = vector.shape_cast %18 : vector<1x512xi1> to vector<1x512xi1>
    %33 = vector.broadcast %32 : vector<1x512xi1> to vector<16x512xi1>
    %34 = vector.broadcast %cst_13 : f32 to vector<16x512xf32>
    %35 = arith.select %33, %31, %34 : vector<16x512xi1>, vector<16x512xf32>
    %36 = arith.addf %29, %35 : vector<16x512xf32>
    %37 = vector.extract_strided_slice %21 {offsets = [48, 0], sizes = [16, 512], strides = [1, 1]} : vector<64x512xf32> to vector<16x512xf32>
    %38 = arith.andi %18, %16 : vector<1x512xi1>
    %c495_i32 = arith.constant 495 : i32
    %39 = tpu.dynamic_rotate %37 by %c495_i32 dim 1 : vector<16x512xf32>, i32 -> vector<16x512xf32>
    %cst_14 = arith.constant 0.000000e+00 : f32
    %40 = vector.shape_cast %38 : vector<1x512xi1> to vector<1x512xi1>
    %41 = vector.broadcast %40 : vector<1x512xi1> to vector<16x512xi1>
    %42 = vector.broadcast %cst_14 : f32 to vector<16x512xf32>
    %43 = arith.select %41, %39, %42 : vector<16x512xi1>, vector<16x512xf32>
    %44 = arith.addf %36, %43 : vector<16x512xf32>
    %c0_15 = arith.constant 0 : index
    %c0_16 = arith.constant 0 : index
    %45 = vector.load %arg5[%c0_15, %c0_16] : memref<16x1xf32, #tpu.memory_space<vmem>>, vector<16x1xf32>
    %46 = vector.broadcast %45 : vector<16x1xf32> to vector<16x512xf32>
    %47 = arith.addf %44, %46 : vector<16x512xf32>
    %cst_17 = arith.constant 0.000000e+00 : f32
    %48 = vector.broadcast %cst_17 : f32 to vector<16x512xf32>
    %49 = arith.maximumf %47, %48 : vector<16x512xf32>
    %c0_18 = arith.constant 0 : index
    %c0_19 = arith.constant 0 : index
    %50 = vector.load %arg6[%c0_18, %c0_19] : memref<32x16xbf16, #tpu.memory_space<vmem>>, vector<32x16xbf16>
    %51 = arith.truncf %49 : vector<16x512xf32> to vector<16x512xbf16>
    %cst_20 = arith.constant dense<0.000000e+00> : vector<32x512xf32>
    %52 = tpu.matmul %50, %51, %cst_20 {dimension_numbers = #tpu.dot_dimension_numbers<[1], [0], [0], [1], [0, 0, 1, 1], [], []>} : vector<32x16xbf16>, vector<16x512xbf16>, vector<32x512xf32> -> vector<32x512xf32>
    %c0_21 = arith.constant 0 : index
    %c0_22 = arith.constant 0 : index
    %53 = vector.load %arg7[%c0_21, %c0_22] : memref<32x1xf32, #tpu.memory_space<vmem>>, vector<32x1xf32>
    %54 = vector.broadcast %53 : vector<32x1xf32> to vector<32x512xf32>
    %55 = arith.addf %52, %54 : vector<32x512xf32>
    %cst_23 = arith.constant 0.000000e+00 : f32
    %56 = vector.broadcast %cst_23 : f32 to vector<32x512xf32>
    %57 = arith.maximumf %55, %56 : vector<32x512xf32>
    %c0_24 = arith.constant 0 : index
    %c0_25 = arith.constant 0 : index
    %58 = vector.load %arg8[%c0_24, %c0_25] : memref<32x512xf32, #tpu.memory_space<vmem>>, vector<32x512xf32>
    tpu.vector_store %arg8[%c0_24, %c0_25], %57 {strides = array<i32>} : memref<32x512xf32, #tpu.memory_space<vmem>>, vector<32x512xf32>,
    return
  }
  func.func @transform_0(%arg0: i32) -> (i32, i32) {
    %c0_i32 = arith.constant 0 : i32
    %c0_i32_0 = arith.constant 0 : i32
    %c0_i32_1 = arith.constant 0 : i32
    return %c0_i32, %c0_i32_0 : i32, i32
  }
  func.func @transform_1(%arg0: i32) -> (i32, i32) {
    %c0_i32 = arith.constant 0 : i32
    %c0_i32_0 = arith.constant 0 : i32
    %c0_i32_1 = arith.constant 0 : i32
    return %c0_i32, %c0_i32_0 : i32, i32
  }
  func.func @transform_2(%arg0: i32) -> (i32, i32) {
    %c0_i32 = arith.constant 0 : i32
    %c0_i32_0 = arith.constant 0 : i32
    %c0_i32_1 = arith.constant 0 : i32
    return %c0_i32, %c0_i32_0 : i32, i32
  }
  func.func @transform_3(%arg0: i32) -> (i32, i32) {
    %c0_i32 = arith.constant 0 : i32
    %c0_i32_0 = arith.constant 0 : i32
    %c0_i32_1 = arith.constant 0 : i32
    return %c0_i32, %c0_i32_0 : i32, i32
  }
  func.func @transform_4(%arg0: i32) -> (i32, i32) {
    %c0_i32 = arith.constant 0 : i32
    %c0_i32_0 = arith.constant 0 : i32
    %c0_i32_1 = arith.constant 0 : i32
    return %c0_i32, %c0_i32_0 : i32, i32
  }
  func.func @transform_5(%arg0: i32) -> (i32, i32) {
    %c0_i32 = arith.constant 0 : i32
    %c0_i32_0 = arith.constant 0 : i32
    %c0_i32_1 = arith.constant 0 : i32
    return %c0_i32, %c0_i32_0 : i32, i32
  }
  func.func @transform_6(%arg0: i32) -> (i32, i32) {
    %c0_i32 = arith.constant 0 : i32
    %c0_i32_0 = arith.constant 0 : i32
    %c0_i32_1 = arith.constant 0 : i32
    return %c0_i32, %c0_i32_0 : i32, i32
  }
  func.func @transform_7(%arg0: i32) -> (i32, i32) {
    %c0_i32 = arith.constant 0 : i32
    %c0_i32_0 = arith.constant 0 : i32
    %c0_i32_1 = arith.constant 0 : i32
    return %c0_i32, %c0_i32_0 : i32, i32
  }
}

</mosaic_0001>

<llo_original>
// kernel: decoder_block_forward.1
$region0: #{decoder_block_forward.1}
  #allocation0 [shape = 'u32[]', space=smem, size = 0x4, offset = 0x4, fixed_abs, tag = 'smem constant byte address 0x4 - core index']
  #allocation1 [shape = 'u32[144,128]{1,0:T(1,128)}', space=vmem, size = 0x12000, scoped, tag = 'internal scratch']
  %s0 = inlined_call_operand.vmem [shape: bf16[16,512], index: 0, kind: input, shape index: {}]
  %s1 = inlined_call_operand.vmem [shape: bf16[4,16], index: 1, kind: input, shape index: {}]
  %s2 = inlined_call_operand.vmem [shape: f32[4,1], index: 2, kind: input, shape index: {}]
  %s3 = inlined_call_operand.vmem [shape: bf16[64,4], index: 3, kind: input, shape index: {}]
  %s4 = inlined_call_operand.vmem [shape: f32[16,1], index: 4, kind: input, shape index: {}]
  %s5 = inlined_call_operand.vmem [shape: bf16[32,16], index: 5, kind: input, shape index: {}]
  %s6 = inlined_call_operand.vmem [shape: f32[32,1], index: 6, kind: input, shape index: {}]
  %s7 = inlined_call_operand.vmem [shape: f32[32,512], index: 7, kind: output, shape index: {}]
  %s8 = sld [smem:[#allocation0]]
  $region38: #{decoder_block_forward.1} parent=0
    _
  %s10 = ssub.s32 1, %s8
  %s11 = scalar_select 0, %s10, %s8
  // Predicated region
  $region2: #{decoder_block_forward.1} parent=0 // pred_check
    _
  $region3: #{decoder_block_forward.1} parent=0 // pred_check_branch
    %13 = sbr.rel (0) target = $region5
  $region4: #{decoder_block_forward.1} parent=0 // pred_region
    _
  $region5: #{decoder_block_forward.1} parent=0 // pred_fallthru
    _
  // Predicated region
  $region6: #{decoder_block_forward.1} parent=0 // pred_check
    _
  $region7: #{decoder_block_forward.1} parent=0 // pred_check_branch
    %15 = sbr.rel (0) target = $region9
  $region8: #{decoder_block_forward.1} parent=0 // pred_region
    _
  $region9: #{decoder_block_forward.1} parent=0 // pred_fallthru
    _
  // Predicated region
  $region10: #{decoder_block_forward.1} parent=0 // pred_check
    _
  $region11: #{decoder_block_forward.1} parent=0 // pred_check_branch
    %17 = sbr.rel (0) target = $region13
  $region12: #{decoder_block_forward.1} parent=0 // pred_region
    _
  $region13: #{decoder_block_forward.1} parent=0 // pred_fallthru
    _
  // Predicated region
  $region14: #{decoder_block_forward.1} parent=0 // pred_check
    _
  $region15: #{decoder_block_forward.1} parent=0 // pred_check_branch
    %19 = sbr.rel (0) target = $region17
  $region16: #{decoder_block_forward.1} parent=0 // pred_region
    _
  $region17: #{decoder_block_forward.1} parent=0 // pred_fallthru
    _
  // Predicated region
  $region18: #{decoder_block_forward.1} parent=0 // pred_check
    _
  $region19: #{decoder_block_forward.1} parent=0 // pred_check_branch
    %21 = sbr.rel (0) target = $region21
  $region20: #{decoder_block_forward.1} parent=0 // pred_region
    _
  $region21: #{decoder_block_forward.1} parent=0 // pred_fallthru
    _
  // Predicated region
  $region22: #{decoder_block_forward.1} parent=0 // pred_check
    _
  $region23: #{decoder_block_forward.1} parent=0 // pred_check_branch
    %23 = sbr.rel (0) target = $region25
  $region24: #{decoder_block_forward.1} parent=0 // pred_region
    _
  $region25: #{decoder_block_forward.1} parent=0 // pred_fallthru
    _
  // Predicated region
  $region26: #{decoder_block_forward.1} parent=0 // pred_check
    _
  $region27: #{decoder_block_forward.1} parent=0 // pred_check_branch
    %25 = sbr.rel (0) target = $region29
  $region28: #{decoder_block_forward.1} parent=0 // pred_region
    _
  $region29: #{decoder_block_forward.1} parent=0 // pred_fallthru
    _
  %v27 = vld [vmem:[%s1] sm:$0x3]
  %v28 = vld [vmem:[%s0] sm:$0xff]
  %v29 = vld [vmem:[%s0 + $0x8] sm:$0xff]
  %v30 = vld [vmem:[%s0 + $0x10] sm:$0xff]
  %v31 = vld [vmem:[%s0 + $0x18] sm:$0xff]
  %v32 = vld [vmem:[%s2] sm:$0xf]
  %34 = vset.pattern.permute.xlu0 0
  %35 = vperm.xlu0 %34, %v32
  %v36 = vpop.permute.xlu0 %35
  %v42 = vunpack.c.l.b16 %v28
  %v43 = vunpack.c.h.b16 %v28
  %v44 = vunpack.c.l.b16 %v29
  %v45 = vunpack.c.h.b16 %v29
  %v46 = vunpack.c.l.b16 %v30
  %v47 = vunpack.c.h.b16 %v30
  %v48 = vunpack.c.l.b16 %v31
  %v49 = vunpack.c.h.b16 %v31
  %v50 = vpack.c.b16 %v46, %v42
  %v51 = vpack.c.b16 %v47, %v43
  %v52 = vpack.c.b16 %v48, %v44
  %v53 = vpack.c.b16 %v49, %v45
  %vm58 = vcmask 130048
  %v60 = vsel %vm58, %v27, 0
  %62 = vmatprep.subr.bf16.mxu0 %v51
  %63 = vmatpush1.bf16.msra.mxu0 %v50
  %64 = vmatprep.subr.bf16.mxu0 0
  %65 = vmatpush1.bf16.msra.mxu0 0
  %66 = vmatprep.subr.bf16.mxu0 0
  %67 = vmatpush1.bf16.msra.mxu0 0
  %68 = vmatprep.subr.bf16.mxu0 0
  %69 = vmatpush1.bf16.msra.mxu0 0
  %70 = vmatprep.subr.bf16.mxu0 0
  %71 = vmatpush1.bf16.msra.mxu0 0
  %72 = vmatprep.subr.bf16.mxu0 0
  %73 = vmatpush1.bf16.msra.mxu0 0
  %74 = vmatprep.subr.bf16.mxu0 0
  %75 = vmatpush1.bf16.msra.mxu0 0
  %76 = vmatprep.subr.bf16.mxu0 0
  %77 = vmatpush1.bf16.msra.mxu0 0
  %78 = vmatprep.subr.bf16.mxu0 0
  %79 = vmatpush1.bf16.msra.mxu0 0
  %80 = vmatprep.subr.bf16.mxu0 0
  %81 = vmatpush1.bf16.msra.mxu0 0
  %82 = vmatprep.subr.bf16.mxu0 0
  %83 = vmatpush1.bf16.msra.mxu0 0
  %84 = vmatprep.subr.bf16.mxu0 0
  %85 = vmatpush1.bf16.msra.mxu0 0
  %86 = vmatprep.subr.bf16.mxu0 0
  %87 = vmatpush1.bf16.msra.mxu0 0
  %88 = vmatprep.subr.bf16.mxu0 0
  %89 = vmatpush1.bf16.msra.mxu0 0
  %90 = vmatprep.subr.bf16.mxu0 0
  %91 = vmatpush1.bf16.msra.mxu0 0
  %92 = vmatprep.subr.bf16.mxu0 0
  %93 = vmatpush1.bf16.msra.mxu0 0
  %94 = vmatprep.mubr.bf16.mxu0 0
  %95 = vmatmul.mubr.bf16.gmra.mrb[0].mxu0 %v60
  %v96 = vpop.f32.mrb[0].mxu0
  %v97 = vadd.f32 %v36, %v96
  %v98 = vpop.f32.mrb[0].mxu0
  %v99 = vadd.f32 %v36, %v98
  %v100 = vpop.f32.mrb[0].mxu0
  %v101 = vpop.f32.mrb[0].mxu0
  %102 = vdwg.mxu0
  %103 = vmatprep.subr.bf16.mxu0 %v53
  %104 = vmatpush1.bf16.msra.mxu0 %v52
  %105 = vmatprep.subr.bf16.mxu0 0
  %106 = vmatpush1.bf16.msra.mxu0 0
  %107 = vmatprep.subr.bf16.mxu0 0
  %108 = vmatpush1.bf16.msra.mxu0 0
  %109 = vmatprep.subr.bf16.mxu0 0
  %110 = vmatpush1.bf16.msra.mxu0 0
  %111 = vmatprep.subr.bf16.mxu0 0
  %112 = vmatpush1.bf16.msra.mxu0 0
  %113 = vmatprep.subr.bf16.mxu0 0
  %114 = vmatpush1.bf16.msra.mxu0 0
  %115 = vmatprep.subr.bf16.mxu0 0
  %116 = vmatpush1.bf16.msra.mxu0 0
  %117 = vmatprep.subr.bf16.mxu0 0
  %118 = vmatpush1.bf16.msra.mxu0 0
  %119 = vmatprep.subr.bf16.mxu0 0
  %120 = vmatpush1.bf16.msra.mxu0 0
  %121 = vmatprep.subr.bf16.mxu0 0
  %122 = vmatpush1.bf16.msra.mxu0 0
  %123 = vmatprep.subr.bf16.mxu0 0
  %124 = vmatpush1.bf16.msra.mxu0 0
  %125 = vmatprep.subr.bf16.mxu0 0
  %126 = vmatpush1.bf16.msra.mxu0 0
  %127 = vmatprep.subr.bf16.mxu0 0
  %128 = vmatpush1.bf16.msra.mxu0 0
  %129 = vmatprep.subr.bf16.mxu0 0
  %130 = vmatpush1.bf16.msra.mxu0 0
  %131 = vmatprep.subr.bf16.mxu0 0
  %132 = vmatpush1.bf16.msra.mxu0 0
  %133 = vmatprep.subr.bf16.mxu0 0
  %134 = vmatpush1.bf16.msra.mxu0 0
  %135 = vmatprep.mubr.bf16.mxu0 0
  %136 = vmatmul.mubr.bf16.gmra.mrb[0].mxu0 %v60
  %v137 = vpop.f32.mrb[0].mxu0
  %v138 = vadd.f32 %v36, %v137
  %v139 = vpop.f32.mrb[0].mxu0
  %v140 = vadd.f32 %v36, %v139
  %v141 = vpop.f32.mrb[0].mxu0
  %v142 = vpop.f32.mrb[0].mxu0
  %143 = vdwg.mxu0
  %v144 = vmax.f32 %v97, 0.0
  %v145 = vmax.f32 %v99, 0.0
  %v146 = vmax.f32 %v138, 0.0
  %v147 = vmax.f32 %v140, 0.0
  %v148 = vlaneseq
  %v149 = vand.u32 %v148, 127
  %v150 = vadd.s32 %v149, 128
  %v151 = vadd.s32 %v149, 256
  %v152 = vadd.s32 %v149, 384
  %v153 = vand.u32 %v149, 15
  %v154 = vand.u32 %v150, 15
  %v155 = vand.u32 %v151, 15
  %v156 = vand.u32 %v152, 15
  %v157 = vshra.s32 %v149, 4
  %v158 = vshra.s32 %v150, 4
  %v159 = vshra.s32 %v151, 4
  %v160 = vshra.s32 %v152, 4
  %v161 = vand.u32 %v157, 15
  %v162 = vand.u32 %v158, 15
  %v163 = vand.u32 %v159, 15
  %v164 = vand.u32 %v160, 15
  %vm165 = vcmp.lt.s32.totalorder %v153, 15
  %vm166 = vcmp.lt.s32.totalorder %v154, 15
  %vm167 = vcmp.lt.s32.totalorder %v155, 15
  %vm168 = vcmp.lt.s32.totalorder %v156, 15
  %vm169 = vcmp.lt.s32.totalorder %v161, 15
  %vm170 = vcmp.lt.s32.totalorder %v162, 15
  %vm171 = vcmp.lt.s32.totalorder %v163, 15
  %vm172 = vcmp.lt.s32.totalorder %v164, 15
  %v173 = vld [vmem:[%s3] sm:$0xf]
  %v174 = vld [vmem:[%s3 + $0x4] sm:$0xf]
  %v175 = vld [vmem:[%s3 + $0x8] sm:$0xf]
  %v176 = vld [vmem:[%s3 + $0xc] sm:$0xf]
  %v177 = vld [vmem:[%s3 + $0x10] sm:$0xf]
  %v178 = vld [vmem:[%s3 + $0x14] sm:$0xf]
  %v179 = vld [vmem:[%s3 + $0x18] sm:$0xf]
  %v180 = vld [vmem:[%s3 + $0x1c] sm:$0xf]
  %v181 = vpack.c.bf16 %v144, %v144
  %v182 = vpack.c.bf16 %v145, %v145
  %v183 = vpack.c.bf16 %v146, %v146
  %v184 = vpack.c.bf16 %v147, %v147
  %v193 = vunpack.c.l.b16 %v173
  %v194 = vunpack.c.l.b16 %v174
  %v195 = vunpack.c.l.b16 %v175
  %v196 = vunpack.c.l.b16 %v176
  %v197 = vunpack.c.l.b16 %v177
  %v198 = vunpack.c.l.b16 %v178
  %v199 = vunpack.c.l.b16 %v179
  %v200 = vunpack.c.l.b16 %v180
  %v201 = vpack.c.b16 %v194, %v193
  %v202 = vpack.c.b16 %v196, %v195
  %v203 = vpack.c.b16 %v198, %v197
  %v204 = vpack.c.b16 %v200, %v199
  %vm205 = vcmask 31744
  %v207 = vsel %vm205, %v201, 0
  %v210 = vsel %vm205, %v202, 0
  %v213 = vsel %vm205, %v203, 0
  %v216 = vsel %vm205, %v204, 0
  %vm218 = vcmask 1041408
  %v220 = vsel %vm218, %v181, 0
  %v223 = vsel %vm218, %v182, 0
  %v226 = vsel %vm218, %v183, 0
  %v229 = vsel %vm218, %v184, 0
  %231 = vmatprep.subr.bf16.mxu0 %v223
  %232 = vmatpush1.bf16.msra.mxu0 %v220
  %233 = vmatprep.subr.bf16.mxu0 0
  %234 = vmatpush1.bf16.msra.mxu0 0
  %235 = vmatprep.subr.bf16.mxu0 0
  %236 = vmatpush1.bf16.msra.mxu0 0
  %237 = vmatprep.subr.bf16.mxu0 0
  %238 = vmatpush1.bf16.msra.mxu0 0
  %239 = vmatprep.subr.bf16.mxu0 0
  %240 = vmatpush1.bf16.msra.mxu0 0
  %241 = vmatprep.subr.bf16.mxu0 0
  %242 = vmatpush1.bf16.msra.mxu0 0
  %243 = vmatprep.subr.bf16.mxu0 0
  %244 = vmatpush1.bf16.msra.mxu0 0
  %245 = vmatprep.subr.bf16.mxu0 0
  %246 = vmatpush1.bf16.msra.mxu0 0
  %247 = vmatprep.subr.bf16.mxu0 0
  %248 = vmatpush1.bf16.msra.mxu0 0
  %249 = vmatprep.subr.bf16.mxu0 0
  %250 = vmatpush1.bf16.msra.mxu0 0
  %251 = vmatprep.subr.bf16.mxu0 0
  %252 = vmatpush1.bf16.msra.mxu0 0
  %253 = vmatprep.subr.bf16.mxu0 0
  %254 = vmatpush1.bf16.msra.mxu0 0
  %255 = vmatprep.subr.bf16.mxu0 0
  %256 = vmatpush1.bf16.msra.mxu0 0
  %257 = vmatprep.subr.bf16.mxu0 0
  %258 = vmatpush1.bf16.msra.mxu0 0
  %259 = vmatprep.subr.bf16.mxu0 0
  %260 = vmatpush1.bf16.msra.mxu0 0
  %261 = vmatprep.subr.bf16.mxu0 0
  %262 = vmatpush1.bf16.msra.mxu0 0
  %263 = vmatprep.mubr.bf16.mxu0 0
  %264 = vmatmul.mubr.bf16.gmra.mrb[0].mxu0 %v207
  %v265 = vpop.f32.mrb[0].mxu0
  %v266 = vadd.f32 0.0, %v265
  %v267 = vpop.f32.mrb[0].mxu0
  %v268 = vadd.f32 0.0, %v267
  %v269 = vpop.f32.mrb[0].mxu0
  %v270 = vadd.f32 0.0, %v269
  %v271 = vpop.f32.mrb[0].mxu0
  %v272 = vadd.f32 0.0, %v271
  %273 = vmatprep.mubr.bf16.mxu0 0
  %274 = vmatmul.mubr.bf16.gmra.mrb[0].mxu0 %v210
  %v275 = vpop.f32.mrb[0].mxu0
  %v276 = vadd.f32 0.0, %v275
  %v277 = vpop.f32.mrb[0].mxu0
  %v278 = vadd.f32 0.0, %v277
  %v279 = vpop.f32.mrb[0].mxu0
  %v280 = vadd.f32 0.0, %v279
  %v281 = vpop.f32.mrb[0].mxu0
  %v282 = vadd.f32 0.0, %v281
  %283 = vmatprep.mubr.bf16.mxu0 0
  %284 = vmatmul.mubr.bf16.gmra.mrb[0].mxu0 %v213
  %v285 = vpop.f32.mrb[0].mxu0
  %v286 = vadd.f32 0.0, %v285
  %v287 = vpop.f32.mrb[0].mxu0
  %v288 = vadd.f32 0.0, %v287
  %v289 = vpop.f32.mrb[0].mxu0
  %v290 = vadd.f32 0.0, %v289
  %v291 = vpop.f32.mrb[0].mxu0
  %v292 = vadd.f32 0.0, %v291
  %293 = vmatprep.mubr.bf16.mxu0 0
  %294 = vmatmul.mubr.bf16.gmra.mrb[0].mxu0 %v216
  %v295 = vpop.f32.mrb[0].mxu0
  %v296 = vadd.f32 0.0, %v295
  %v297 = vpop.f32.mrb[0].mxu0
  %v298 = vadd.f32 0.0, %v297
  %v299 = vpop.f32.mrb[0].mxu0
  %v300 = vadd.f32 0.0, %v299
  %v301 = vpop.f32.mrb[0].mxu0
  %v302 = vadd.f32 0.0, %v301
  %303 = vdwg.mxu0
  %304 = vmatprep.subr.bf16.mxu0 %v229
  %305 = vmatpush1.bf16.msra.mxu0 %v226
  %306 = vmatprep.subr.bf16.mxu0 0
  %307 = vmatpush1.bf16.msra.mxu0 0
  %308 = vmatprep.subr.bf16.mxu0 0
  %309 = vmatpush1.bf16.msra.mxu0 0
  %310 = vmatprep.subr.bf16.mxu0 0
  %311 = vmatpush1.bf16.msra.mxu0 0
  %312 = vmatprep.subr.bf16.mxu0 0
  %313 = vmatpush1.bf16.msra.mxu0 0
  %314 = vmatprep.subr.bf16.mxu0 0
  %315 = vmatpush1.bf16.msra.mxu0 0
  %316 = vmatprep.subr.bf16.mxu0 0
  %317 = vmatpush1.bf16.msra.mxu0 0
  %318 = vmatprep.subr.bf16.mxu0 0
  %319 = vmatpush1.bf16.msra.mxu0 0
  %320 = vmatprep.subr.bf16.mxu0 0
  %321 = vmatpush1.bf16.msra.mxu0 0
  %322 = vmatprep.subr.bf16.mxu0 0
  %323 = vmatpush1.bf16.msra.mxu0 0
  %324 = vmatprep.subr.bf16.mxu0 0
  %325 = vmatpush1.bf16.msra.mxu0 0
  %326 = vmatprep.subr.bf16.mxu0 0
  %327 = vmatpush1.bf16.msra.mxu0 0
  %328 = vmatprep.subr.bf16.mxu0 0
  %329 = vmatpush1.bf16.msra.mxu0 0
  %330 = vmatprep.subr.bf16.mxu0 0
  %331 = vmatpush1.bf16.msra.mxu0 0
  %332 = vmatprep.subr.bf16.mxu0 0
  %333 = vmatpush1.bf16.msra.mxu0 0
  %334 = vmatprep.subr.bf16.mxu0 0
  %335 = vmatpush1.bf16.msra.mxu0 0
  %336 = vmatprep.mubr.bf16.mxu0 0
  %337 = vmatmul.mubr.bf16.gmra.mrb[0].mxu0 %v207
  %v338 = vpop.f32.mrb[0].mxu0
  %v339 = vadd.f32 0.0, %v338
  %v340 = vpop.f32.mrb[0].mxu0
  %v341 = vadd.f32 0.0, %v340
  %v342 = vpop.f32.mrb[0].mxu0
  %v343 = vadd.f32 0.0, %v342
  %v344 = vpop.f32.mrb[0].mxu0
  %v345 = vadd.f32 0.0, %v344
  %346 = vmatprep.mubr.bf16.mxu0 0
  %347 = vmatmul.mubr.bf16.gmra.mrb[0].mxu0 %v210
  %v348 = vpop.f32.mrb[0].mxu0
  %v349 = vadd.f32 0.0, %v348
  %v350 = vpop.f32.mrb[0].mxu0
  %v351 = vadd.f32 0.0, %v350
  %v352 = vpop.f32.mrb[0].mxu0
  %v353 = vadd.f32 0.0, %v352
  %v354 = vpop.f32.mrb[0].mxu0
  %v355 = vadd.f32 0.0, %v354
  %356 = vmatprep.mubr.bf16.mxu0 0
  %357 = vmatmul.mubr.bf16.gmra.mrb[0].mxu0 %v213
  %v358 = vpop.f32.mrb[0].mxu0
  %v359 = vadd.f32 0.0, %v358
  %v360 = vpop.f32.mrb[0].mxu0
  %v361 = vadd.f32 0.0, %v360
  %v362 = vpop.f32.mrb[0].mxu0
  %v363 = vadd.f32 0.0, %v362
  %v364 = vpop.f32.mrb[0].mxu0
  %v365 = vadd.f32 0.0, %v364
  %366 = vmatprep.mubr.bf16.mxu0 0
  %367 = vmatmul.mubr.bf16.gmra.mrb[0].mxu0 %v216
  %v368 = vpop.f32.mrb[0].mxu0
  %v369 = vadd.f32 0.0, %v368
  %v370 = vpop.f32.mrb[0].mxu0
  %v371 = vadd.f32 0.0, %v370
  %v372 = vpop.f32.mrb[0].mxu0
  %v373 = vadd.f32 0.0, %v372
  %v374 = vpop.f32.mrb[0].mxu0
  %v375 = vadd.f32 0.0, %v374
  %376 = vdwg.mxu0
  %377 = vrot.lane.b32.xlu0 %v276, 127
  %v378 = vpop.permute.xlu0 %377
  %379 = vrot.lane.b32.xlu0 %v280, 127
  %v380 = vpop.permute.xlu0 %379
  %381 = vrot.lane.b32.xlu0 %v278, 127
  %v382 = vpop.permute.xlu0 %381
  %383 = vrot.lane.b32.xlu0 %v282, 127
  %v384 = vpop.permute.xlu0 %383
  %385 = vrot.lane.b32.xlu0 %v349, 127
  %v386 = vpop.permute.xlu0 %385
  %387 = vrot.lane.b32.xlu0 %v353, 127
  %v388 = vpop.permute.xlu0 %387
  %389 = vrot.lane.b32.xlu0 %v351, 127
  %v390 = vpop.permute.xlu0 %389
  %391 = vrot.lane.b32.xlu0 %v355, 127
  %v392 = vpop.permute.xlu0 %391
  %vm393 = vcmp.lt.s32.totalorder %v149, 127
  %v394 = vsel %vm393, %v386, %v390
  %v395 = vsel %vm393, %v388, %v392
  %v396 = vsel %vm393, %v382, %v386
  %v397 = vsel %vm393, %v384, %v388
  %v398 = vsel %vm393, %v378, %v382
  %v399 = vsel %vm393, %v380, %v384
  %v400 = vsel %vm393, %v390, %v378
  %v401 = vsel %vm393, %v392, %v380
  %v402 = vsel %vm165, 1, 0
  %v403 = vsel %vm166, 1, 0
  %v404 = vsel %vm167, 1, 0
  %v405 = vsel %vm168, 1, 0
  %vm406 = vcmp.eq.s32.totalorder %v402, 1
  %vm407 = vcmp.eq.s32.totalorder %v403, 1
  %vm408 = vcmp.eq.s32.totalorder %v404, 1
  %vm409 = vcmp.eq.s32.totalorder %v405, 1
  %v410 = vsel %vm406, %v398, 0.0
  %v411 = vsel %vm407, %v396, 0.0
  %v412 = vsel %vm408, %v394, 0.0
  %v413 = vsel %vm409, %v400, 0.0
  %v414 = vsel %vm406, %v399, 0.0
  %v415 = vsel %vm407, %v397, 0.0
  %v416 = vsel %vm408, %v395, 0.0
  %v417 = vsel %vm409, %v401, 0.0
  %v418 = vadd.f32 %v266, %v410
  %v419 = vadd.f32 %v268, %v411
  %v420 = vadd.f32 %v339, %v412
  %v421 = vadd.f32 %v341, %v413
  %v422 = vadd.f32 %v270, %v414
  %v423 = vadd.f32 %v272, %v415
  %v424 = vadd.f32 %v343, %v416
  %v425 = vadd.f32 %v345, %v417
  %426 = vrot.lane.b32.xlu0 %v286, 112
  %v427 = vpop.permute.xlu0 %426
  %428 = vrot.lane.b32.xlu0 %v290, 112
  %v429 = vpop.permute.xlu0 %428
  %430 = vrot.lane.b32.xlu0 %v288, 112
  %v431 = vpop.permute.xlu0 %430
  %432 = vrot.lane.b32.xlu0 %v292, 112
  %v433 = vpop.permute.xlu0 %432
  %434 = vrot.lane.b32.xlu0 %v359, 112
  %v435 = vpop.permute.xlu0 %434
  %436 = vrot.lane.b32.xlu0 %v363, 112
  %v437 = vpop.permute.xlu0 %436
  %438 = vrot.lane.b32.xlu0 %v361, 112
  %v439 = vpop.permute.xlu0 %438
  %440 = vrot.lane.b32.xlu0 %v365, 112
  %v441 = vpop.permute.xlu0 %440
  %vm442 = vcmp.lt.s32.totalorder %v149, 112
  %v443 = vsel %vm442, %v435, %v439
  %v444 = vsel %vm442, %v437, %v441
  %v445 = vsel %vm442, %v431, %v435
  %v446 = vsel %vm442, %v433, %v437
  %v447 = vsel %vm442, %v427, %v431
  %v448 = vsel %vm442, %v429, %v433
  %v449 = vsel %vm442, %v439, %v427
  %v450 = vsel %vm442, %v441, %v429
  %v451 = vsel %vm169, 1, 0
  %v452 = vsel %vm170, 1, 0
  %v453 = vsel %vm171, 1, 0
  %v454 = vsel %vm172, 1, 0
  %vm455 = vcmp.eq.s32.totalorder %v451, 1
  %vm456 = vcmp.eq.s32.totalorder %v452, 1
  %vm457 = vcmp.eq.s32.totalorder %v453, 1
  %vm458 = vcmp.eq.s32.totalorder %v454, 1
  %v459 = vsel %vm455, %v447, 0.0
  %v460 = vsel %vm456, %v445, 0.0
  %v461 = vsel %vm457, %v443, 0.0
  %v462 = vsel %vm458, %v449, 0.0
  %v463 = vsel %vm455, %v448, 0.0
  %v464 = vsel %vm456, %v446, 0.0
  %v465 = vsel %vm457, %v444, 0.0
  %v466 = vsel %vm458, %v450, 0.0
  %v467 = vadd.f32 %v418, %v459
  %v468 = vadd.f32 %v419, %v460
  %v469 = vadd.f32 %v420, %v461
  %v470 = vadd.f32 %v421, %v462
  %v471 = vadd.f32 %v422, %v463
  %v472 = vadd.f32 %v423, %v464
  %v473 = vadd.f32 %v424, %v465
  %v474 = vadd.f32 %v425, %v466
  %vm475 = vmand %vm169, %vm165
  %vm476 = vmand %vm170, %vm166
  %vm477 = vmand %vm171, %vm167
  %vm478 = vmand %vm172, %vm168
  %479 = vrot.lane.b32.xlu0 %v296, 111
  %v480 = vpop.permute.xlu0 %479
  %481 = vrot.lane.b32.xlu0 %v300, 111
  %v482 = vpop.permute.xlu0 %481
  %483 = vrot.lane.b32.xlu0 %v298, 111
  %v484 = vpop.permute.xlu0 %483
  %485 = vrot.lane.b32.xlu0 %v302, 111
  %v486 = vpop.permute.xlu0 %485
  %487 = vrot.lane.b32.xlu0 %v369, 111
  %v488 = vpop.permute.xlu0 %487
  %489 = vrot.lane.b32.xlu0 %v373, 111
  %v490 = vpop.permute.xlu0 %489
  %491 = vrot.lane.b32.xlu0 %v371, 111
  %v492 = vpop.permute.xlu0 %491
  %493 = vrot.lane.b32.xlu0 %v375, 111
  %v494 = vpop.permute.xlu0 %493
  %vm495 = vcmp.lt.s32.totalorder %v149, 111
  %v496 = vsel %vm495, %v488, %v492
  %v497 = vsel %vm495, %v490, %v494
  %v498 = vsel %vm495, %v484, %v488
  %v499 = vsel %vm495, %v486, %v490
  %v500 = vsel %vm495, %v480, %v484
  %v501 = vsel %vm495, %v482, %v486
  %v502 = vsel %vm495, %v492, %v480
  %v503 = vsel %vm495, %v494, %v482
  %v504 = vsel %vm475, 1, 0
  %v505 = vsel %vm476, 1, 0
  %v506 = vsel %vm477, 1, 0
  %v507 = vsel %vm478, 1, 0
  %vm508 = vcmp.eq.s32.totalorder %v504, 1
  %vm509 = vcmp.eq.s32.totalorder %v505, 1
  %vm510 = vcmp.eq.s32.totalorder %v506, 1
  %vm511 = vcmp.eq.s32.totalorder %v507, 1
  %v512 = vsel %vm508, %v500, 0.0
  %v513 = vsel %vm509, %v498, 0.0
  %v514 = vsel %vm510, %v496, 0.0
  %v515 = vsel %vm511, %v502, 0.0
  %v516 = vsel %vm508, %v501, 0.0
  %v517 = vsel %vm509, %v499, 0.0
  %v518 = vsel %vm510, %v497, 0.0
  %v519 = vsel %vm511, %v503, 0.0
  %v520 = vadd.f32 %v467, %v512
  %v521 = vadd.f32 %v468, %v513
  %v522 = vadd.f32 %v469, %v514
  %v523 = vadd.f32 %v470, %v515
  %v524 = vadd.f32 %v471, %v516
  %v525 = vadd.f32 %v472, %v517
  %v526 = vadd.f32 %v473, %v518
  %v527 = vadd.f32 %v474, %v519
  %v528 = vld [vmem:[%s4] sm:$0xff]
  %v529 = vld [vmem:[%s4 + $0x8] sm:$0xff]
  %531 = vset.pattern.permute.xlu0 0
  %532 = vperm.xlu0 %531, %v528
  %v533 = vpop.permute.xlu0 %532
  %536 = vset.pattern.permute.xlu0 0
  %537 = vperm.xlu0 %536, %v529
  %v538 = vpop.permute.xlu0 %537
  %v540 = vadd.f32 %v520, %v533
  %v541 = vadd.f32 %v521, %v533
  %v542 = vadd.f32 %v522, %v533
  %v543 = vadd.f32 %v523, %v533
  %v544 = vadd.f32 %v524, %v538
  %v545 = vadd.f32 %v525, %v538
  %v546 = vadd.f32 %v526, %v538
  %v547 = vadd.f32 %v527, %v538
  %v548 = vmax.f32 %v540, 0.0
  %v549 = vmax.f32 %v541, 0.0
  %v550 = vmax.f32 %v542, 0.0
  %v551 = vmax.f32 %v543, 0.0
  %v552 = vmax.f32 %v544, 0.0
  %v553 = vmax.f32 %v545, 0.0
  %v554 = vmax.f32 %v546, 0.0
  %v555 = vmax.f32 %v547, 0.0
  %v556 = vld [vmem:[%s5] sm:$0xf]
  %v557 = vld [vmem:[%s5 + $0x4] sm:$0xf]
  %v558 = vld [vmem:[%s5 + $0x8] sm:$0xf]
  %v559 = vld [vmem:[%s5 + $0xc] sm:$0xf]
  %v560 = vpack.c.bf16 %v552, %v548
  %v561 = vpack.c.bf16 %v553, %v549
  %v562 = vpack.c.bf16 %v554, %v550
  %v563 = vpack.c.bf16 %v555, %v551
  %v564 = vld [vmem:[%s6] sm:$0xff]
  %v565 = vld [vmem:[%s6 + $0x8] sm:$0xff]
  %v566 = vld [vmem:[%s6 + $0x10] sm:$0xff]
  %v567 = vld [vmem:[%s6 + $0x18] sm:$0xff]
  %569 = vset.pattern.permute.xlu0 0
  %570 = vperm.xlu0 %569, %v564
  %v571 = vpop.permute.xlu0 %570
  %574 = vset.pattern.permute.xlu0 0
  %575 = vperm.xlu0 %574, %v565
  %v576 = vpop.permute.xlu0 %575
  %579 = vset.pattern.permute.xlu0 0
  %580 = vperm.xlu0 %579, %v566
  %v581 = vpop.permute.xlu0 %580
  %584 = vset.pattern.permute.xlu0 0
  %585 = vperm.xlu0 %584, %v567
  %v586 = vpop.permute.xlu0 %585
  %v592 = vunpack.c.l.b16 %v556
  %v593 = vunpack.c.l.b16 %v557
  %v594 = vunpack.c.l.b16 %v558
  %v595 = vunpack.c.l.b16 %v559
  %v596 = vpack.c.b16 %v593, %v592
  %v597 = vpack.c.b16 %v595, %v594
  %v599 = vsel %vm58, %v596, 0
  %v602 = vsel %vm58, %v597, 0
  %604 = vmatprep.subr.bf16.mxu0 %v561
  %605 = vmatpush1.bf16.msra.mxu0 %v560
  %606 = vmatprep.subr.bf16.mxu0 0
  %607 = vmatpush1.bf16.msra.mxu0 0
  %608 = vmatprep.subr.bf16.mxu0 0
  %609 = vmatpush1.bf16.msra.mxu0 0
  %610 = vmatprep.subr.bf16.mxu0 0
  %611 = vmatpush1.bf16.msra.mxu0 0
  %612 = vmatprep.subr.bf16.mxu0 0
  %613 = vmatpush1.bf16.msra.mxu0 0
  %614 = vmatprep.subr.bf16.mxu0 0
  %615 = vmatpush1.bf16.msra.mxu0 0
  %616 = vmatprep.subr.bf16.mxu0 0
  %617 = vmatpush1.bf16.msra.mxu0 0
  %618 = vmatprep.subr.bf16.mxu0 0
  %619 = vmatpush1.bf16.msra.mxu0 0
  %620 = vmatprep.subr.bf16.mxu0 0
  %621 = vmatpush1.bf16.msra.mxu0 0
  %622 = vmatprep.subr.bf16.mxu0 0
  %623 = vmatpush1.bf16.msra.mxu0 0
  %624 = vmatprep.subr.bf16.mxu0 0
  %625 = vmatpush1.bf16.msra.mxu0 0
  %626 = vmatprep.subr.bf16.mxu0 0
  %627 = vmatpush1.bf16.msra.mxu0 0
  %628 = vmatprep.subr.bf16.mxu0 0
  %629 = vmatpush1.bf16.msra.mxu0 0
  %630 = vmatprep.subr.bf16.mxu0 0
  %631 = vmatpush1.bf16.msra.mxu0 0
  %632 = vmatprep.subr.bf16.mxu0 0
  %633 = vmatpush1.bf16.msra.mxu0 0
  %634 = vmatprep.subr.bf16.mxu0 0
  %635 = vmatpush1.bf16.msra.mxu0 0
  %636 = vmatprep.mubr.bf16.mxu0 0
  %637 = vmatmul.mubr.bf16.gmra.mrb[0].mxu0 %v599
  %v638 = vpop.f32.mrb[0].mxu0
  %v639 = vadd.f32 %v571, %v638
  %v640 = vpop.f32.mrb[0].mxu0
  %v641 = vadd.f32 %v571, %v640
  %v642 = vpop.f32.mrb[0].mxu0
  %v643 = vadd.f32 %v576, %v642
  %v644 = vpop.f32.mrb[0].mxu0
  %v645 = vadd.f32 %v576, %v644
  %646 = vmatprep.mubr.bf16.mxu0 0
  %647 = vmatmul.mubr.bf16.gmra.mrb[0].mxu0 %v602
  %v648 = vpop.f32.mrb[0].mxu0
  %v649 = vadd.f32 %v581, %v648
  %v650 = vpop.f32.mrb[0].mxu0
  %v651 = vadd.f32 %v581, %v650
  %v652 = vpop.f32.mrb[0].mxu0
  %v653 = vadd.f32 %v586, %v652
  %v654 = vpop.f32.mrb[0].mxu0
  %v655 = vadd.f32 %v586, %v654
  %656 = vdwg.mxu0
  %657 = vmatprep.subr.bf16.mxu0 %v563
  %658 = vmatpush1.bf16.msra.mxu0 %v562
  %659 = vmatprep.subr.bf16.mxu0 0
  %660 = vmatpush1.bf16.msra.mxu0 0
  %661 = vmatprep.subr.bf16.mxu0 0
  %662 = vmatpush1.bf16.msra.mxu0 0
  %663 = vmatprep.subr.bf16.mxu0 0
  %664 = vmatpush1.bf16.msra.mxu0 0
  %665 = vmatprep.subr.bf16.mxu0 0
  %666 = vmatpush1.bf16.msra.mxu0 0
  %667 = vmatprep.subr.bf16.mxu0 0
  %668 = vmatpush1.bf16.msra.mxu0 0
  %669 = vmatprep.subr.bf16.mxu0 0
  %670 = vmatpush1.bf16.msra.mxu0 0
  %671 = vmatprep.subr.bf16.mxu0 0
  %672 = vmatpush1.bf16.msra.mxu0 0
  %673 = vmatprep.subr.bf16.mxu0 0
  %674 = vmatpush1.bf16.msra.mxu0 0
  %675 = vmatprep.subr.bf16.mxu0 0
  %676 = vmatpush1.bf16.msra.mxu0 0
  %677 = vmatprep.subr.bf16.mxu0 0
  %678 = vmatpush1.bf16.msra.mxu0 0
  %679 = vmatprep.subr.bf16.mxu0 0
  %680 = vmatpush1.bf16.msra.mxu0 0
  %681 = vmatprep.subr.bf16.mxu0 0
  %682 = vmatpush1.bf16.msra.mxu0 0
  %683 = vmatprep.subr.bf16.mxu0 0
  %684 = vmatpush1.bf16.msra.mxu0 0
  %685 = vmatprep.subr.bf16.mxu0 0
  %686 = vmatpush1.bf16.msra.mxu0 0
  %687 = vmatprep.subr.bf16.mxu0 0
  %688 = vmatpush1.bf16.msra.mxu0 0
  %689 = vmatprep.mubr.bf16.mxu0 0
  %690 = vmatmul.mubr.bf16.gmra.mrb[0].mxu0 %v599
  %v691 = vpop.f32.mrb[0].mxu0
  %v692 = vadd.f32 %v571, %v691
  %v693 = vpop.f32.mrb[0].mxu0
  %v694 = vadd.f32 %v571, %v693
  %v695 = vpop.f32.mrb[0].mxu0
  %v696 = vadd.f32 %v576, %v695
  %v697 = vpop.f32.mrb[0].mxu0
  %v698 = vadd.f32 %v576, %v697
  %699 = vmatprep.mubr.bf16.mxu0 0
  %700 = vmatmul.mubr.bf16.gmra.mrb[0].mxu0 %v602
  %v701 = vpop.f32.mrb[0].mxu0
  %v702 = vadd.f32 %v581, %v701
  %v703 = vpop.f32.mrb[0].mxu0
  %v704 = vadd.f32 %v581, %v703
  %v705 = vpop.f32.mrb[0].mxu0
  %v706 = vadd.f32 %v586, %v705
  %v707 = vpop.f32.mrb[0].mxu0
  %v708 = vadd.f32 %v586, %v707
  %709 = vdwg.mxu0
  %v710 = vmax.f32 %v639, 0.0
  %v711 = vmax.f32 %v641, 0.0
  %v712 = vmax.f32 %v692, 0.0
  %v713 = vmax.f32 %v694, 0.0
  %v714 = vmax.f32 %v643, 0.0
  %v715 = vmax.f32 %v645, 0.0
  %v716 = vmax.f32 %v696, 0.0
  %v717 = vmax.f32 %v698, 0.0
  %v718 = vmax.f32 %v649, 0.0
  %v719 = vmax.f32 %v651, 0.0
  %v720 = vmax.f32 %v702, 0.0
  %v721 = vmax.f32 %v704, 0.0
  %v722 = vmax.f32 %v653, 0.0
  %v723 = vmax.f32 %v655, 0.0
  %v724 = vmax.f32 %v706, 0.0
  %v725 = vmax.f32 %v708, 0.0
  %726 = vst [vmem:[%s7] sm:$0xff] %v710
  %727 = vst [vmem:[%s7 + $0x8] sm:$0xff] %v711
  %728 = vst [vmem:[%s7 + $0x10] sm:$0xff] %v712
  %729 = vst [vmem:[%s7 + $0x18] sm:$0xff] %v713
  %730 = vst [vmem:[%s7 + $0x20] sm:$0xff] %v714
  %731 = vst [vmem:[%s7 + $0x28] sm:$0xff] %v715
  %732 = vst [vmem:[%s7 + $0x30] sm:$0xff] %v716
  %733 = vst [vmem:[%s7 + $0x38] sm:$0xff] %v717
  %734 = vst [vmem:[%s7 + $0x40] sm:$0xff] %v718
  %735 = vst [vmem:[%s7 + $0x48] sm:$0xff] %v719
  %736 = vst [vmem:[%s7 + $0x50] sm:$0xff] %v720
  %737 = vst [vmem:[%s7 + $0x58] sm:$0xff] %v721
  %738 = vst [vmem:[%s7 + $0x60] sm:$0xff] %v722
  %739 = vst [vmem:[%s7 + $0x68] sm:$0xff] %v723
  %740 = vst [vmem:[%s7 + $0x70] sm:$0xff] %v724
  %741 = vst [vmem:[%s7 + $0x78] sm:$0xff] %v725
  // Predicated region
  $region30: #{decoder_block_forward.1} parent=0 // pred_check
    _
  $region31: #{decoder_block_forward.1} parent=0 // pred_check_branch
    %743 = sbr.rel (0) target = $region33
  $region32: #{decoder_block_forward.1} parent=0 // pred_region
    _
  $region33: #{decoder_block_forward.1} parent=0 // pred_fallthru
    _
  // Predicated region
  $region34: #{decoder_block_forward.1} parent=0 // pred_check
    _
  $region35: #{decoder_block_forward.1} parent=0 // pred_check_branch
    %745 = sbr.rel (0) target = $region37
  $region36: #{decoder_block_forward.1} parent=0 // pred_region
    _
  $region37: #{decoder_block_forward.1} parent=0 // pred_fallthru
    _

</llo_original>
